<compile_context>
chip_gen: v7x
topology: tpu7x:2x2x1
jax: 0.10.0
libtpu: 0.0.40
codegen_flags: <defaults>
</compile_context>

<pallas_src>
import functools

import jax
import jax.numpy as jnp
from jax.experimental import pallas as pl
from jax.experimental.pallas import tpu as pltpu


_NEG_INIT = float(jnp.finfo(jnp.float32).min)  # finite -> no inf-inf NaNs


def _make_kernel(n_valid, tile_rows, tiles_per_shard, real_tiles, total_tiles):
    last_tile = real_tiles - 1
    rem = n_valid - last_tile * tile_rows          # valid rows in last real tile
    needs_mask = (rem != tile_rows) or (total_tiles != real_tiles)

    def kernel(x_ref, w_ref, b_ref, acc_out, m_out, l_out, m_sc, l_sc, acc_sc):
        s = pl.program_id(0)                       # shard (parallel) axis
        j = pl.program_id(1)                       # reduction axis inside shard

        @pl.when(j == 0)
        def _init():
            m_sc[...] = jnp.full_like(m_sc, _NEG_INIT)
            l_sc[...] = jnp.zeros_like(l_sc)
            acc_sc[...] = jnp.zeros_like(acc_sc)

        def gate(x):
            # gate_nn(x) for this tile, lane-dense as (1, TN): NT-form MXU
            # matmul (contraction over F), f32 accumulate, scalar bias from
            # SMEM (kept for fidelity; softmax is shift-invariant).
            return jax.lax.dot_general(
                w_ref[...], x, (((1,), (1,)), ((), ())),
                preferred_element_type=jnp.float32) + b_ref[0]

        def update(x, scores):
            # Online-softmax update over the node dimension.
            m_prev = m_sc[...]                                          # (1,1)
            m_new = jnp.maximum(m_prev, jnp.max(scores, axis=1, keepdims=True))
            alpha = jnp.exp(m_prev - m_new)                             # (1,1)
            p = jnp.exp(scores - m_new)                                 # (1,TN)
            l_sc[...] = alpha * l_sc[...] + jnp.sum(p, axis=1, keepdims=True)
            # Node reduction on the MXU: (1,TN) @ (TN,F), f32 accumulate.
            acc_sc[...] = alpha * acc_sc[...] + jnp.dot(
                p.astype(x.dtype), x, preferred_element_type=jnp.float32)
            m_sc[...] = m_new

        if not needs_mask:
            x = x_ref[...]
            update(x, gate(x))
        else:
            g = s * tiles_per_shard + j            # global tile index

            @pl.when(g < last_tile)                # fully valid tiles: no mask
            def _full():
                x = x_ref[...]
                update(x, gate(x))

            @pl.when(g == last_tile)               # the (single) partial tile
            def _partial():
                x = x_ref[...]
                # Rows past N hold unspecified data (possibly NaN/Inf): kill
                # them with a select so p @ x cannot produce NaN.
                row = jax.lax.broadcasted_iota(jnp.int32, (tile_rows, 1), 0)
                x = jnp.where(row < rem, x, jnp.zeros_like(x))
                scores = gate(x)
                col = jax.lax.broadcasted_iota(jnp.int32, (1, tile_rows), 1)
                scores = jnp.where(col < rem, scores, -jnp.inf)
                update(x, scores)
            # g > last_tile (shard round-up padding): skipped entirely.

        @pl.when(j == tiles_per_shard - 1)
        def _finalize():
            acc_out[...] = acc_sc[...]
            m_out[...] = m_sc[...]
            l_out[...] = l_sc[...]

    return kernel


def _multi_tensorcore():
    """Best-effort: does this chip have >1 TensorCore per device (v7x-style)?"""
    try:
        kind = getattr(jax.devices()[0], "device_kind", "").lower()
    except Exception:
        return True
    single_tc = ("v5 lite", "v5e", "v5litepod", "v6 lite", "v6e", "trillium")
    return not any(t in kind for t in single_tc)


def _x_block_spec(tile_rows, feat, index_map, buffer_count):
    if buffer_count and buffer_count != 2:
        try:
            return pl.BlockSpec((tile_rows, feat), index_map,
                                pipeline_mode=pl.Buffered(buffer_count))
        except (TypeError, AttributeError):
            pass
    return pl.BlockSpec((tile_rows, feat), index_map)


@functools.partial(jax.jit, static_argnames=("block_rows", "num_shards"))
def global_attention(x, gate_w, gate_b, *, block_rows=None, num_shards=None):
    """x: (N, F); gate_w: (F, 1); gate_b: scalar / (1,) / (1, 1). Returns (F,)."""
    N, F = x.shape
    itemsize = jnp.dtype(x.dtype).itemsize
    sub = max(8, 32 // itemsize)              # native sublane packing (8/16/32)
    f_lanes = pl.cdiv(F, 128) * 128           # VMEM lanes per row (layout only)

    # ---- generation-aware VMEM budget --------------------------------------
    try:
        vmem_cap = int(getattr(pltpu.get_tpu_info(), "vmem_capacity_bytes", 0)) \
            or (64 << 20)
    except Exception:
        vmem_cap = 64 << 20
    if vmem_cap >= (128 << 20):               # v5e / v6e: plenty of VMEM
        limit_cap, buffer_count = 96 << 20, 3
    else:                                     # v7x: 64 MiB physical, headroom
        limit_cap, buffer_count = 48 << 20, 2

    # ---- row-tile sizing: ~2-4 MiB of VMEM per x block, <= 4096 rows -------
    if block_rows is None:
        cap = (4 << 20) // (f_lanes * itemsize)
    else:
        cap = int(block_rows)
    cap = max(sub, min(4096, (cap // sub) * sub))
    fit = (limit_cap - (8 << 20)) // (buffer_count * f_lanes * itemsize)
    cap = max(sub, min(cap, (fit // sub) * sub))

    if cap >= N:                              # single full-extent block
        tile_rows, real_tiles = N, 1
    else:
        tile_rows, real_tiles = cap, pl.cdiv(N, cap)

    # ---- shard axis (v7x megacore); only worth it with >= 4 tiles/shard ----
    if real_tiles <= 1:
        shards = 1
    elif num_shards is not None:
        shards = max(1, min(int(num_shards), real_tiles))
    else:
        shards = 2 if (_multi_tensorcore() and real_tiles >= 8) else 1
    tiles_per_shard = pl.cdiv(real_tiles, shards)
    shards = pl.cdiv(real_tiles, tiles_per_shard)   # drop empty shards
    total_tiles = shards * tiles_per_shard

    per_buf = tile_rows * f_lanes * itemsize
    vmem_limit = int(max(32 << 20,
                         min(limit_cap, buffer_count * per_buf + (8 << 20))))

    w_row = jnp.reshape(gate_w, (1, F)).astype(x.dtype)
    b = jnp.reshape(jnp.asarray(gate_b, dtype=jnp.float32), (-1,))[:1]

    kernel = _make_kernel(N, tile_rows, tiles_per_shard, real_tiles, total_tiles)

    def x_index_map(s, j):
        # Clamp so shard round-up tiles (skipped in-kernel) never issue an
        # out-of-range DMA.
        return (jnp.minimum(s * tiles_per_shard + j, real_tiles - 1), 0)

    acc_p, m_p, l_p = pl.pallas_call(
        kernel,
        out_shape=(
            jax.ShapeDtypeStruct((shards, 1, F), jnp.float32),
            jax.ShapeDtypeStruct((shards, 1, 1), jnp.float32),
            jax.ShapeDtypeStruct((shards, 1, 1), jnp.float32),
        ),
        grid_spec=pltpu.PrefetchScalarGridSpec(
            num_scalar_prefetch=0,
            grid=(shards, tiles_per_shard),
            in_specs=[
                _x_block_spec(tile_rows, F, x_index_map, buffer_count),
                pl.BlockSpec((1, F), lambda s, j: (0, 0)),
                pl.BlockSpec(memory_space=pltpu.MemorySpace.SMEM),
            ],
            out_specs=[
                pl.BlockSpec((None, 1, F), lambda s, j: (s, 0, 0)),
                pl.BlockSpec((None, 1, 1), lambda s, j: (s, 0, 0)),
                pl.BlockSpec((None, 1, 1), lambda s, j: (s, 0, 0)),
            ],
            scratch_shapes=[
                pltpu.VMEM((1, 1), jnp.float32),     # running max m
                pltpu.VMEM((1, 1), jnp.float32),     # running denom l
                pltpu.VMEM((1, F), jnp.float32),     # running weighted sum
            ],
        ),
        compiler_params=pltpu.CompilerParams(
            dimension_semantics=("parallel", "arbitrary"),
            vmem_limit_bytes=vmem_limit,
        ),
    )(x, w_row, b)

    # Combine per-shard online-softmax partials (O(shards * F), plain JAX).
    m = m_p[:, 0, 0]                                   # (S,)
    l = l_p[:, 0, 0]                                   # (S,)
    acc = acc_p[:, 0, :]                               # (S, F)
    m_max = jnp.max(m)
    scale = jnp.exp(m - m_max)
    denom = jnp.sum(l * scale)
    out = jnp.sum(acc * scale[:, None], axis=0) / denom
    return out.astype(x.dtype)


def global_attention_ref(x, gate_w, gate_b):
    scores = (x @ gate_w).reshape(-1) + jnp.reshape(gate_b, (-1,))[0]
    attn = jax.nn.softmax(scores, axis=0)
    return x.T @ attn


if __name__ == "__main__":
    key = jax.random.PRNGKey(0)
    keys = jax.random.split(key, 12)

    def run_case(i, N, F, dtype, **kw):
        kx, kw_, kb = keys[3 * i], keys[3 * i + 1], keys[3 * i + 2]
        x = jax.random.normal(kx, (N, F), dtype=jnp.float32)
        gate_w = jax.random.normal(kw_, (F, 1), dtype=jnp.float32) * 0.1
        gate_b = jax.random.normal(kb, (1, 1), dtype=jnp.float32) * 0.1
        xq = x.astype(dtype)
        out = global_attention(xq, gate_w, gate_b, **kw)
        jax.block_until_ready(out)
        ref = global_attention_ref(xq.astype(jnp.float32), gate_w, gate_b)
        assert out.shape == (F,)
        tol = 5e-2 if dtype == jnp.bfloat16 else 2e-4
        ok = bool(jnp.allclose(out.astype(jnp.float32), ref, atol=tol, rtol=tol))
        assert ok, (i, out, ref)

    # Case 1: tiny, single full-extent block (gate_nn = nn.Linear(F, 1)).
    run_case(0, 8, 32, jnp.float32)
    # Case 2: node tiling + remainder masking + 2-shard online-softmax combine.
    run_case(1, 200, 72, jnp.float32, block_rows=64, num_shards=2)
    # Case 3: odd tile count -> one shard round-up tile (clamped DMA + skip).
    run_case(2, 300, 40, jnp.float32, block_rows=64, num_shards=2)
    # Case 4: bf16 input exercises 16-row sublane packing + flash-style p cast.
    run_case(3, 100, 64, jnp.bfloat16, block_rows=32)

    print("KERNEL_OK")
</pallas_src>

<mosaic_0001>
module attributes {stable_mosaic.version = 11 : i64} {
  func.func @kernel(%arg0: i32, %arg1: i32, %arg2: memref<8x32xf32, #tpu.memory_space<vmem>>, %arg3: memref<1x32xf32, #tpu.memory_space<vmem>>, %arg4: memref<1xf32, #tpu.memory_space<smem>>, %arg5: memref<1x1x32xf32, #tpu.memory_space<vmem>>, %arg6: memref<1x1x1xf32, #tpu.memory_space<vmem>>, %arg7: memref<1x1x1xf32, #tpu.memory_space<vmem>>, %arg8: memref<1x1xf32, #tpu.memory_space<vmem>>, %arg9: memref<1x1xf32, #tpu.memory_space<vmem>>, %arg10: memref<1x32xf32, #tpu.memory_space<vmem>>) attributes {dimension_semantics = [#tpu.dimension_semantics<parallel>, #tpu.dimension_semantics<arbitrary>], iteration_bounds = array<i64: 1, 1>, scalar_prefetch = 0 : i64, scratch_operands = 3 : i64, tpu.core_type = #tpu.core_type<tc>, window_params = [{transform_indices = @transform_0, window_bounds = array<i64: 8, 32>}, {pipeline_mode = #tpu.pipeline_mode<synchronous>, transform_indices = @transform_1, window_bounds = array<i64: 1, 32>}, {transform_indices = @transform_2, window_bounds = array<i64: 1>}, {transform_indices = @transform_3, window_bounds = array<i64: 1, 1, 32>}, {transform_indices = @transform_4, window_bounds = array<i64: 1, 1, 1>}, {transform_indices = @transform_5, window_bounds = array<i64: 1, 1, 1>}]} {
    %c0_i32 = arith.constant 0 : i32
    %0 = arith.cmpi eq, %arg1, %c0_i32 : i32
    %1 = arith.extui %0 : i1 to i32
    %c0_i32_0 = arith.constant 0 : i32
    %2 = arith.cmpi ne, %1, %c0_i32_0 : i32
    scf.if %2 {
      %cst_22 = arith.constant -3.40282347E+38 : f32
      %34 = vector.broadcast %cst_22 : f32 to vector<1x1xf32>
      %c0_23 = arith.constant 0 : index
      %c0_24 = arith.constant 0 : index
      %35 = vector.load %arg8[%c0_23, %c0_24] : memref<1x1xf32, #tpu.memory_space<vmem>>, vector<1x1xf32>
      tpu.vector_store %arg8[%c0_23, %c0_24], %34 {strides = array<i32>} : memref<1x1xf32, #tpu.memory_space<vmem>>, vector<1x1xf32>,
      %cst_25 = arith.constant 0.000000e+00 : f32
      %36 = vector.broadcast %cst_25 : f32 to vector<1x1xf32>
      %c0_26 = arith.constant 0 : index
      %c0_27 = arith.constant 0 : index
      %37 = vector.load %arg9[%c0_26, %c0_27] : memref<1x1xf32, #tpu.memory_space<vmem>>, vector<1x1xf32>
      tpu.vector_store %arg9[%c0_26, %c0_27], %36 {strides = array<i32>} : memref<1x1xf32, #tpu.memory_space<vmem>>, vector<1x1xf32>,
      %cst_28 = arith.constant 0.000000e+00 : f32
      %38 = vector.broadcast %cst_28 : f32 to vector<1x32xf32>
      %c0_29 = arith.constant 0 : index
      %c0_30 = arith.constant 0 : index
      %39 = vector.load %arg10[%c0_29, %c0_30] : memref<1x32xf32, #tpu.memory_space<vmem>>, vector<1x32xf32>
      tpu.vector_store %arg10[%c0_29, %c0_30], %38 {strides = array<i32>} : memref<1x32xf32, #tpu.memory_space<vmem>>, vector<1x32xf32>,
    } else {
    }
    %c0 = arith.constant 0 : index
    %c0_1 = arith.constant 0 : index
    %3 = vector.load %arg2[%c0, %c0_1] : memref<8x32xf32, #tpu.memory_space<vmem>>, vector<8x32xf32>
    %c0_2 = arith.constant 0 : index
    %c0_3 = arith.constant 0 : index
    %4 = vector.load %arg3[%c0_2, %c0_3] : memref<1x32xf32, #tpu.memory_space<vmem>>, vector<1x32xf32>
    %cst = arith.constant dense<0.000000e+00> : vector<1x8xf32>
    %5 = tpu.matmul %4, %3, %cst {dimension_numbers = #tpu.dot_dimension_numbers<[1], [1], [0], [0], [0, 0, 1, 0], [], []>} : vector<1x32xf32>, vector<8x32xf32>, vector<1x8xf32> -> vector<1x8xf32>
    %c0_4 = arith.constant 0 : index
    %6 = memref.load %arg4[%c0_4] : memref<1xf32, #tpu.memory_space<smem>>
    %7 = vector.broadcast %6 : f32 to vector<1x8xf32>
    %8 = arith.addf %5, %7 : vector<1x8xf32>
    %c0_5 = arith.constant 0 : index
    %c0_6 = arith.constant 0 : index
    %9 = vector.load %arg8[%c0_5, %c0_6] : memref<1x1xf32, #tpu.memory_space<vmem>>, vector<1x1xf32>
    %cst_7 = arith.constant dense<0xFF800000> : vector<1xf32>
    %10 = vector.multi_reduction <maximumf>, %8, %cst_7 [1] : vector<1x8xf32> to vector<1xf32>
    %11 = vector.shape_cast %10 : vector<1xf32> to vector<1x1xf32>
    %12 = arith.maximumf %9, %11 : vector<1x1xf32>
    %13 = arith.subf %9, %12 : vector<1x1xf32>
    %14 = math.exp %13 : vector<1x1xf32>
    %15 = vector.broadcast %12 : vector<1x1xf32> to vector<1x8xf32>
    %16 = arith.subf %8, %15 : vector<1x8xf32>
    %17 = math.exp %16 : vector<1x8xf32>
    %c0_8 = arith.constant 0 : index
    %c0_9 = arith.constant 0 : index
    %18 = vector.load %arg9[%c0_8, %c0_9] : memref<1x1xf32, #tpu.memory_space<vmem>>, vector<1x1xf32>
    %19 = arith.mulf %14, %18 : vector<1x1xf32>
    %cst_10 = arith.constant dense<0.000000e+00> : vector<1xf32>
    %20 = vector.multi_reduction <add>, %17, %cst_10 [1] : vector<1x8xf32> to vector<1xf32>
    %21 = vector.shape_cast %20 : vector<1xf32> to vector<1x1xf32>
    %22 = arith.addf %19, %21 : vector<1x1xf32>
    %c0_11 = arith.constant 0 : index
    %c0_12 = arith.constant 0 : index
    %23 = vector.load %arg9[%c0_11, %c0_12] : memref<1x1xf32, #tpu.memory_space<vmem>>, vector<1x1xf32>
    tpu.vector_store %arg9[%c0_11, %c0_12], %22 {strides = array<i32>} : memref<1x1xf32, #tpu.memory_space<vmem>>, vector<1x1xf32>,
    %c0_13 = arith.constant 0 : index
    %c0_14 = arith.constant 0 : index
    %24 = vector.load %arg10[%c0_13, %c0_14] : memref<1x32xf32, #tpu.memory_space<vmem>>, vector<1x32xf32>
    %25 = vector.broadcast %14 : vector<1x1xf32> to vector<1x32xf32>
    %26 = arith.mulf %25, %24 : vector<1x32xf32>
    %cst_15 = arith.constant dense<0.000000e+00> : vector<1x32xf32>
    %27 = tpu.matmul %17, %3, %cst_15 {dimension_numbers = #tpu.dot_dimension_numbers<[1], [0], [0], [1], [0, 0, 1, 1], [], []>} : vector<1x8xf32>, vector<8x32xf32>, vector<1x32xf32> -> vector<1x32xf32>
    %28 = arith.addf %26, %27 : vector<1x32xf32>
    %c0_16 = arith.constant 0 : index
    %c0_17 = arith.constant 0 : index
    %29 = vector.load %arg10[%c0_16, %c0_17] : memref<1x32xf32, #tpu.memory_space<vmem>>, vector<1x32xf32>
    tpu.vector_store %arg10[%c0_16, %c0_17], %28 {strides = array<i32>} : memref<1x32xf32, #tpu.memory_space<vmem>>, vector<1x32xf32>,
    %c0_18 = arith.constant 0 : index
    %c0_19 = arith.constant 0 : index
    %30 = vector.load %arg8[%c0_18, %c0_19] : memref<1x1xf32, #tpu.memory_space<vmem>>, vector<1x1xf32>
    tpu.vector_store %arg8[%c0_18, %c0_19], %12 {strides = array<i32>} : memref<1x1xf32, #tpu.memory_space<vmem>>, vector<1x1xf32>,
    %c0_i32_20 = arith.constant 0 : i32
    %31 = arith.cmpi eq, %arg1, %c0_i32_20 : i32
    %32 = arith.extui %31 : i1 to i32
    %c0_i32_21 = arith.constant 0 : i32
    %33 = arith.cmpi ne, %32, %c0_i32_21 : i32
    scf.if %33 {
      %c0_22 = arith.constant 0 : index
      %c0_23 = arith.constant 0 : index
      %34 = vector.load %arg10[%c0_22, %c0_23] : memref<1x32xf32, #tpu.memory_space<vmem>>, vector<1x32xf32>
      %c0_24 = arith.constant 0 : index
      %c0_25 = arith.constant 0 : index
      %c0_26 = arith.constant 0 : index
      %35 = vector.load %arg5[%c0_24, %c0_25, %c0_26] : memref<1x1x32xf32, #tpu.memory_space<vmem>>, vector<1x1x32xf32>
      %36 = vector.shape_cast %35 : vector<1x1x32xf32> to vector<1x32xf32>
      %37 = vector.shape_cast %34 : vector<1x32xf32> to vector<1x1x32xf32>
      tpu.vector_store %arg5[%c0_24, %c0_25, %c0_26], %37 {strides = array<i32>} : memref<1x1x32xf32, #tpu.memory_space<vmem>>, vector<1x1x32xf32>,
      %c0_27 = arith.constant 0 : index
      %c0_28 = arith.constant 0 : index
      %38 = vector.load %arg8[%c0_27, %c0_28] : memref<1x1xf32, #tpu.memory_space<vmem>>, vector<1x1xf32>
      %c0_29 = arith.constant 0 : index
      %c0_30 = arith.constant 0 : index
      %c0_31 = arith.constant 0 : index
      %39 = vector.load %arg6[%c0_29, %c0_30, %c0_31] : memref<1x1x1xf32, #tpu.memory_space<vmem>>, vector<1x1x1xf32>
      %40 = vector.shape_cast %39 : vector<1x1x1xf32> to vector<1x1xf32>
      %41 = vector.shape_cast %38 : vector<1x1xf32> to vector<1x1x1xf32>
      tpu.vector_store %arg6[%c0_29, %c0_30, %c0_31], %41 {strides = array<i32>} : memref<1x1x1xf32, #tpu.memory_space<vmem>>, vector<1x1x1xf32>,
      %c0_32 = arith.constant 0 : index
      %c0_33 = arith.constant 0 : index
      %42 = vector.load %arg9[%c0_32, %c0_33] : memref<1x1xf32, #tpu.memory_space<vmem>>, vector<1x1xf32>
      %c0_34 = arith.constant 0 : index
      %c0_35 = arith.constant 0 : index
      %c0_36 = arith.constant 0 : index
      %43 = vector.load %arg7[%c0_34, %c0_35, %c0_36] : memref<1x1x1xf32, #tpu.memory_space<vmem>>, vector<1x1x1xf32>
      %44 = vector.shape_cast %43 : vector<1x1x1xf32> to vector<1x1xf32>
      %45 = vector.shape_cast %42 : vector<1x1xf32> to vector<1x1x1xf32>
      tpu.vector_store %arg7[%c0_34, %c0_35, %c0_36], %45 {strides = array<i32>} : memref<1x1x1xf32, #tpu.memory_space<vmem>>, vector<1x1x1xf32>,
    } else {
    }
    return
  }
  func.func @transform_0(%arg0: i32, %arg1: i32) -> (i32, i32) {
    %c1_i32 = arith.constant 1 : i32
    %0 = arith.muli %arg0, %c1_i32 : i32
    %1 = arith.addi %0, %arg1 : i32
    %c0_i32 = arith.constant 0 : i32
    %2 = arith.minsi %1, %c0_i32 : i32
    %c0_i32_0 = arith.constant 0 : i32
    %c0_i32_1 = arith.constant 0 : i32
    return %2, %c0_i32_0 : i32, i32
  }
  func.func @transform_1(%arg0: i32, %arg1: i32) -> (i32, i32) {
    %c0_i32 = arith.constant 0 : i32
    %c0_i32_0 = arith.constant 0 : i32
    %c0_i32_1 = arith.constant 0 : i32
    return %c0_i32, %c0_i32_0 : i32, i32
  }
  func.func @transform_2(%arg0: i32, %arg1: i32) -> i32 {
    %c0_i32 = arith.constant 0 : i32
    %c0_i32_0 = arith.constant 0 : i32
    return %c0_i32 : i32
  }
  func.func @transform_3(%arg0: i32, %arg1: i32) -> (i32, i32, i32) {
    %c0_i32 = arith.constant 0 : i32
    %c0_i32_0 = arith.constant 0 : i32
    %c0_i32_1 = arith.constant 0 : i32
    return %arg0, %c0_i32, %c0_i32_0 : i32, i32, i32
  }
  func.func @transform_4(%arg0: i32, %arg1: i32) -> (i32, i32, i32) {
    %c0_i32 = arith.constant 0 : i32
    %c0_i32_0 = arith.constant 0 : i32
    %c0_i32_1 = arith.constant 0 : i32
    return %arg0, %c0_i32, %c0_i32_0 : i32, i32, i32
  }
  func.func @transform_5(%arg0: i32, %arg1: i32) -> (i32, i32, i32) {
    %c0_i32 = arith.constant 0 : i32
    %c0_i32_0 = arith.constant 0 : i32
    %c0_i32_1 = arith.constant 0 : i32
    return %arg0, %c0_i32, %c0_i32_0 : i32, i32, i32
  }
}

</mosaic_0001>

<llo_original>
// kernel: global_attention.1
$region0: #{global_attention.1}
  #allocation0 [shape = 'u32[]', space=smem, size = 0x4, offset = 0x4, fixed_abs, tag = 'smem constant byte address 0x4 - core index']
  #allocation1 [shape = 'u32[144,128]{1,0:T(1,128)}', space=vmem, size = 0x12000, scoped, tag = 'internal scratch']
  #allocation2 [shape = 'f32[1,1]{1,0:T(1,128)}', space=vmem, size = 0x200, scoped, tag = 'scratch operand']
  #allocation3 [shape = 'f32[1,1]{1,0:T(1,128)}', space=vmem, size = 0x200, scoped, tag = 'scratch operand']
  #allocation4 [shape = 'f32[1,32]{1,0:T(1,128)}', space=vmem, size = 0x200, scoped, tag = 'scratch operand']
  #allocation5 [shape = 'f32[1]{0:T(128)S(6)}', space=smem, size = 0x200, scoped, tag = 'scoped memory for global_attention.1']
  %s0 = inlined_call_operand.vmem [shape: f32[8,32], index: 0, kind: input, shape index: {}]
  %s1 = inlined_call_operand.vmem [shape: f32[1,32], index: 1, kind: input, shape index: {}]
  %s2 = inlined_call_operand.<no memory space> [shape: f32[1], index: 2, kind: input, shape index: {}]
  %s3 = inlined_call_operand.vmem [shape: f32[1,1,32], index: 3, kind: output, shape index: {0}]
  %s4 = inlined_call_operand.hbm [shape: f32[1,1,1], index: 4, kind: output, shape index: {1}]
  %s5 = inlined_call_operand.hbm [shape: f32[1,1,1], index: 5, kind: output, shape index: {2}]
  %6 = xla_tuple %s3, %s4, %s5
  %s7 = sld [smem:[#allocation0]]
  $region46: #{global_attention.1} parent=0
    _
  %s9 = ssub.s32 1, %s7
  %s10 = scalar_select 0, %s9, %s7
  %11 = sst [smem:[#allocation5]] %s2
  $region1: #{global_attention.1} parent=0
    #allocation6 [shape = 'u8[512]{0}', space=vmem, size = 0x400, scoped, tag = 'output window, operand 1, single buffered']
    #allocation7 [shape = 's32[1]{0}', space=sflag, size = 0x4, scoped, tag = 'scoped memory for global_attention.1']
    #allocation8 [shape = 'u8[512]{0}', space=vmem, size = 0x400, scoped, tag = 'output window, operand 2, single buffered']
    #allocation9 [shape = 's32[1]{0}', space=sflag, size = 0x4, scoped, tag = 'scoped memory for global_attention.1']
    %12 = vsyncpa [#allocation7], 0
    %13 = vsyncpa [#allocation9], 0
    // Predicated region
    $region2: #{global_attention.1} parent=1 // pred_check
      _
    $region3: #{global_attention.1} parent=1 // pred_check_branch
      %15 = sbr.rel (0) target = $region5
    $region4: #{global_attention.1} parent=1 // pred_region
      %s16 = sadd.s32 0, 0
      %p17 = scmp.lt.s32.totalorder %s16, 0
      %s18 = scalar_select %p17, %s16, 0
      %p19 = scmp.lt.s32.totalorder %s18, 0
      %s20 = scalar_select %p19, %s18, 0
      %s21 = smul.addr %s20, 8
      %s22 = scalar_lea.vmem %s0, %s21
      %s23 = sadd.s32 0, 0
      %p24 = scmp.lt.s32.totalorder %s23, 0
      %s25 = scalar_select %p24, %s23, 0
    $region5: #{global_attention.1} parent=1 // pred_fallthru
      _
    // Predicated region
    $region6: #{global_attention.1} parent=1 // pred_check
      _
    $region7: #{global_attention.1} parent=1 // pred_check_branch
      %27 = sbr.rel (0) target = $region9
    $region8: #{global_attention.1} parent=1 // pred_region
      _
    $region9: #{global_attention.1} parent=1 // pred_fallthru
      _
    // Predicated region
    $region10: #{global_attention.1} parent=1 // pred_check
      _
    $region11: #{global_attention.1} parent=1 // pred_check_branch
      %29 = sbr.rel (0) target = $region13
    $region12: #{global_attention.1} parent=1 // pred_region
      _
    $region13: #{global_attention.1} parent=1 // pred_fallthru
      _
    %s30 = sadd.s32 0, 0
    %p31 = scmp.lt.s32.totalorder %s30, 0
    %s32 = scalar_select %p31, %s30, 0
    %p33 = scmp.lt.s32.totalorder %s32, 0
    %s34 = scalar_select %p33, %s32, 0
    %s35 = smul.addr %s34, 8
    %s36 = scalar_lea.vmem %s0, %s35
    %s37 = sadd.s32 0, 0
    %p38 = scmp.lt.s32.totalorder %s37, 0
    %s39 = scalar_select %p38, %s37, 0
    %p40 = scmp.lt.s32.totalorder %s39, 0
    %s41 = scalar_select %p40, %s39, 0
    %s42 = smul.addr %s41, 8
    %s43 = scalar_lea.vmem %s0, %s42
    %s44 = sadd.s32 0, 0
    %p45 = scmp.lt.s32.totalorder %s44, 0
    %s46 = scalar_select %p45, %s44, 0
    %p47 = scmp.eq.s32.totalorder 0, 0
    // Predicated region
    $region14: #{global_attention.1} parent=1 // pred_check
      %p48 = pneg %p47
    $region15: #{global_attention.1} parent=1 // pred_check_branch
      %50 = sbr.rel (%p48) target = $region17
    $region16: #{global_attention.1} parent=1 // pred_region
      %vm51 = vcmask 0
      %52 = vst.msk [vmem:[#allocation2] sm:$0x1] %vm51, -3.4028235e+38
      %53 = vst.msk [vmem:[#allocation3] sm:$0x1] %vm51, 0.0
      %vm54 = vcmask 253952
      %55 = vst.msk [vmem:[#allocation4] sm:$0x1] %vm54, 0.0
    $region17: #{global_attention.1} parent=1 // pred_fallthru
      _
    %v56 = vld [vmem:[%s43] sm:$0xff]
    %v57 = vld [vmem:[%s1] sm:$0x1]
    %s58 = sld [smem:[#allocation5]]
    %v59 = vstv %s58
    %vm60 = vcmask 261120
    %v62 = vsel %vm60, %v57, 0
    %v65 = vsel %vm60, %v56, 0
    %67 = vmatprep.subr.mxu0 0.0
    %68 = vmatpush1.xpose.msra.mxu0 %v65
    %69 = vmatprep.subr.mxu0 0.0
    %70 = vmatpush1.xpose.msra.mxu0 0.0
    %71 = vmatprep.subr.mxu0 0.0
    %72 = vmatpush1.xpose.msra.mxu0 0.0
    %73 = vmatprep.subr.mxu0 0.0
    %74 = vmatpush1.xpose.msra.mxu0 0.0
    %75 = vmatprep.subr.mxu0 0.0
    %76 = vmatpush1.xpose.msra.mxu0 0.0
    %77 = vmatprep.subr.mxu0 0.0
    %78 = vmatpush1.xpose.msra.mxu0 0.0
    %79 = vmatprep.subr.mxu0 0.0
    %80 = vmatpush1.xpose.msra.mxu0 0.0
    %81 = vmatprep.subr.mxu0 0.0
    %82 = vmatpush1.xpose.msra.mxu0 0.0
    %83 = vmatprep.subr.mxu0 0.0
    %84 = vmatpush1.xpose.msra.mxu0 0.0
    %85 = vmatprep.subr.mxu0 0.0
    %86 = vmatpush1.xpose.msra.mxu0 0.0
    %87 = vmatprep.subr.mxu0 0.0
    %88 = vmatpush1.xpose.msra.mxu0 0.0
    %89 = vmatprep.subr.mxu0 0.0
    %90 = vmatpush1.xpose.msra.mxu0 0.0
    %91 = vmatprep.subr.mxu0 0.0
    %92 = vmatpush1.xpose.msra.mxu0 0.0
    %93 = vmatprep.subr.mxu0 0.0
    %94 = vmatpush1.xpose.msra.mxu0 0.0
    %95 = vmatprep.subr.mxu0 0.0
    %96 = vmatpush1.xpose.msra.mxu0 0.0
    %97 = vmatprep.subr.mxu0 0.0
    %98 = vmatpush1.xpose.msra.mxu0 0.0
    %99 = vmatprep.subr.mxu0 0.0
    %100 = vmatpush1.xpose.msra.mxu0 0.0
    %101 = vmatprep.subr.mxu0 0.0
    %102 = vmatpush1.xpose.msra.mxu0 0.0
    %103 = vmatprep.subr.mxu0 0.0
    %104 = vmatpush1.xpose.msra.mxu0 0.0
    %105 = vmatprep.subr.mxu0 0.0
    %106 = vmatpush1.xpose.msra.mxu0 0.0
    %107 = vmatprep.subr.mxu0 0.0
    %108 = vmatpush1.xpose.msra.mxu0 0.0
    %109 = vmatprep.subr.mxu0 0.0
    %110 = vmatpush1.xpose.msra.mxu0 0.0
    %111 = vmatprep.subr.mxu0 0.0
    %112 = vmatpush1.xpose.msra.mxu0 0.0
    %113 = vmatprep.subr.mxu0 0.0
    %114 = vmatpush1.xpose.msra.mxu0 0.0
    %115 = vmatprep.subr.mxu0 0.0
    %116 = vmatpush1.xpose.msra.mxu0 0.0
    %117 = vmatprep.subr.mxu0 0.0
    %118 = vmatpush1.xpose.msra.mxu0 0.0
    %119 = vmatprep.subr.mxu0 0.0
    %120 = vmatpush1.xpose.msra.mxu0 0.0
    %121 = vmatprep.subr.mxu0 0.0
    %122 = vmatpush1.xpose.msra.mxu0 0.0
    %123 = vmatprep.subr.mxu0 0.0
    %124 = vmatpush1.xpose.msra.mxu0 0.0
    %125 = vmatprep.subr.mxu0 0.0
    %126 = vmatpush1.xpose.msra.mxu0 0.0
    %127 = vmatprep.subr.mxu0 0.0
    %128 = vmatpush1.xpose.msra.mxu0 0.0
    %129 = vmatprep.subr.mxu0 0.0
    %130 = vmatpush1.xpose.msra.mxu0 0.0
    %131 = vmatprep.mubr.f32.mxu0 0.0
    %132 = vmatmul.mubr.f32.gmra.mrb[0].mxu0 %v62
    %v133 = vpop.f32.mrb[0].mxu0
    %v134 = vadd.f32 %v59, %v133
    %v135 = vpop.f32.mrb[0].mxu0
    %136 = vdwg.mxu0
    %v137 = vld [vmem:[#allocation2] sm:$0x1]
    %vm138 = vcmask 57344
    %v139 = vsel %vm138, %v134, -inf
    %140 = vmax.xlane.f32.xlu0 %v139
    %v141 = vpop.xlane.xlu0 %140
    %v142 = vmax.f32 %v137, %v141
    %v143 = vsub.f32 %v137, %v142
    %v144 = vmul.f32 %v143, 1.442695
    %v145 = vpow.pop %v144
    %147 = vset.pattern.permute.xlu0 0
    %148 = vperm.xlu0 %147, %v142
    %v149 = vpop.permute.xlu0 %148
    %v151 = vlaneseq
    %v152 = vshrl.u32 %v151, 7
    %v153 = vsub.s32 0, %v152
    %v154 = vrot.slane %v149, %v153
    %v155 = vsub.f32 %v134, %v154
    %v156 = vmul.f32 %v155, 1.442695
    %v157 = vpow.pop %v156
    %v158 = vld [vmem:[#allocation3] sm:$0x1]
    %v159 = vmul.f32 %v145, %v158
    %v160 = vsel %vm138, %v157, 0.0
    %161 = vadd.xlane.f32.xlu0 %v160
    %v162 = vpop.xlane.xlu0 %161
    %v163 = vadd.f32 %v159, %v162
    %vm164 = vcmask 0
    %165 = vst.msk [vmem:[#allocation3] sm:$0x1] %vm164, %v163
    %v166 = vld [vmem:[#allocation4] sm:$0x1]
    %168 = vset.pattern.permute.xlu0 0
    %169 = vperm.xlu0 %168, %v145
    %v170 = vpop.permute.xlu0 %169
    %v172 = vlaneseq
    %v173 = vshrl.u32 %v172, 7
    %v174 = vsub.s32 0, %v173
    %v175 = vrot.slane %v170, %v174
    %v176 = vmul.f32 %v175, %v166
    %vm177 = vcmask 64512
    %v179 = vsel %vm177, %v157, 0
    %181 = vmatprep.subr.mxu0 0.0
    %182 = vmatpush1.msra.mxu0 %v56
    %183 = vmatprep.subr.mxu0 0.0
    %184 = vmatpush1.msra.mxu0 0.0
    %185 = vmatprep.subr.mxu0 0.0
    %186 = vmatpush1.msra.mxu0 0.0
    %187 = vmatprep.subr.mxu0 0.0
    %188 = vmatpush1.msra.mxu0 0.0
    %189 = vmatprep.subr.mxu0 0.0
    %190 = vmatpush1.msra.mxu0 0.0
    %191 = vmatprep.subr.mxu0 0.0
    %192 = vmatpush1.msra.mxu0 0.0
    %193 = vmatprep.subr.mxu0 0.0
    %194 = vmatpush1.msra.mxu0 0.0
    %195 = vmatprep.subr.mxu0 0.0
    %196 = vmatpush1.msra.mxu0 0.0
    %197 = vmatprep.subr.mxu0 0.0
    %198 = vmatpush1.msra.mxu0 0.0
    %199 = vmatprep.subr.mxu0 0.0
    %200 = vmatpush1.msra.mxu0 0.0
    %201 = vmatprep.subr.mxu0 0.0
    %202 = vmatpush1.msra.mxu0 0.0
    %203 = vmatprep.subr.mxu0 0.0
    %204 = vmatpush1.msra.mxu0 0.0
    %205 = vmatprep.subr.mxu0 0.0
    %206 = vmatpush1.msra.mxu0 0.0
    %207 = vmatprep.subr.mxu0 0.0
    %208 = vmatpush1.msra.mxu0 0.0
    %209 = vmatprep.subr.mxu0 0.0
    %210 = vmatpush1.msra.mxu0 0.0
    %211 = vmatprep.subr.mxu0 0.0
    %212 = vmatpush1.msra.mxu0 0.0
    %213 = vmatprep.subr.mxu0 0.0
    %214 = vmatpush1.msra.mxu0 0.0
    %215 = vmatprep.subr.mxu0 0.0
    %216 = vmatpush1.msra.mxu0 0.0
    %217 = vmatprep.subr.mxu0 0.0
    %218 = vmatpush1.msra.mxu0 0.0
    %219 = vmatprep.subr.mxu0 0.0
    %220 = vmatpush1.msra.mxu0 0.0
    %221 = vmatprep.subr.mxu0 0.0
    %222 = vmatpush1.msra.mxu0 0.0
    %223 = vmatprep.subr.mxu0 0.0
    %224 = vmatpush1.msra.mxu0 0.0
    %225 = vmatprep.subr.mxu0 0.0
    %226 = vmatpush1.msra.mxu0 0.0
    %227 = vmatprep.subr.mxu0 0.0
    %228 = vmatpush1.msra.mxu0 0.0
    %229 = vmatprep.subr.mxu0 0.0
    %230 = vmatpush1.msra.mxu0 0.0
    %231 = vmatprep.subr.mxu0 0.0
    %232 = vmatpush1.msra.mxu0 0.0
    %233 = vmatprep.subr.mxu0 0.0
    %234 = vmatpush1.msra.mxu0 0.0
    %235 = vmatprep.subr.mxu0 0.0
    %236 = vmatpush1.msra.mxu0 0.0
    %237 = vmatprep.subr.mxu0 0.0
    %238 = vmatpush1.msra.mxu0 0.0
    %239 = vmatprep.subr.mxu0 0.0
    %240 = vmatpush1.msra.mxu0 0.0
    %241 = vmatprep.subr.mxu0 0.0
    %242 = vmatpush1.msra.mxu0 0.0
    %243 = vmatprep.subr.mxu0 0.0
    %244 = vmatpush1.msra.mxu0 0.0
    %245 = vmatprep.mubr.f32.mxu0 0.0
    %246 = vmatmul.mubr.f32.gmra.mrb[0].mxu0 %v179
    %v247 = vpop.f32.mrb[0].mxu0
    %v248 = vadd.f32 0.0, %v247
    %v249 = vpop.f32.mrb[0].mxu0
    %250 = vdwg.mxu0
    %v251 = vadd.f32 %v176, %v248
    %vm252 = vcmask 253952
    %253 = vst.msk [vmem:[#allocation4] sm:$0x1] %vm252, %v251
    %254 = vst.msk [vmem:[#allocation2] sm:$0x1] %vm164, %v142
    // Predicated region
    $region18: #{global_attention.1} parent=1 // pred_check
      %p255 = pneg %p47
    $region19: #{global_attention.1} parent=1 // pred_check_branch
      %257 = sbr.rel (%p255) target = $region21
    $region20: #{global_attention.1} parent=1 // pred_region
      %v258 = vld [vmem:[#allocation4] sm:$0x1]
      %259 = vst.msk [vmem:[%s3] sm:$0x1] %vm252, %v258
      %v260 = vld [vmem:[#allocation2] sm:$0x1]
      %261 = vst.msk [vmem:[#allocation6] sm:$0x1] %vm164, %v260
      %v262 = vld [vmem:[#allocation3] sm:$0x1]
      %263 = vst.msk [vmem:[#allocation8] sm:$0x1] %vm164, %v262
    $region21: #{global_attention.1} parent=1 // pred_fallthru
      _
    // Predicated region
    $region22: #{global_attention.1} parent=1 // pred_check
      _
    $region23: #{global_attention.1} parent=1 // pred_check_branch
      %265 = sbr.rel (0) target = $region25
    $region24: #{global_attention.1} parent=1 // pred_region
      _
    $region25: #{global_attention.1} parent=1 // pred_fallthru
      _
    // Predicated region
    $region26: #{global_attention.1} parent=1 // pred_check
      _
    $region27: #{global_attention.1} parent=1 // pred_check_branch
      %267 = sbr.rel (0) target = $region29
    $region28: #{global_attention.1} parent=1 // pred_region
      %s269 = ssub.s32 16, 16
      %270 = vsyncadd [#allocation7], %s269
      %s272 = sshll.u32 [#allocation6], 4
      %s273 = int_to_ptr.vmem [resolvable:$true] %s272
      %275 = dma.vmem_to_hbm [thread:$0]  %s273, 16, %s4, [#allocation7]
    $region29: #{global_attention.1} parent=1 // pred_fallthru
      _
    // Predicated region
    $region30: #{global_attention.1} parent=1 // pred_check
      _
    $region31: #{global_attention.1} parent=1 // pred_check_branch
      %277 = sbr.rel (0) target = $region33
    $region32: #{global_attention.1} parent=1 // pred_region
      %s279 = ssub.s32 16, 16
      %280 = vsyncadd [#allocation9], %s279
      %s282 = sshll.u32 [#allocation8], 4
      %s283 = int_to_ptr.vmem [resolvable:$true] %s282
      %285 = dma.vmem_to_hbm [thread:$0]  %s283, 16, %s5, [#allocation9]
    $region33: #{global_attention.1} parent=1 // pred_fallthru
      _
    // Predicated region
    $region34: #{global_attention.1} parent=1 // pred_check
      _
    $region35: #{global_attention.1} parent=1 // pred_check_branch
      %287 = sbr.rel (0) target = $region37
    $region36: #{global_attention.1} parent=1 // pred_region
      _
    $region37: #{global_attention.1} parent=1 // pred_fallthru
      _
    // Predicated region
    $region38: #{global_attention.1} parent=1 // pred_check
      _
    $region39: #{global_attention.1} parent=1 // pred_check_branch
      %289 = sbr.rel (0) target = $region41
    $region40: #{global_attention.1} parent=1 // pred_region
      %290 = dma.done [#allocation7], 16
    $region41: #{global_attention.1} parent=1 // pred_fallthru
      _
    // Predicated region
    $region42: #{global_attention.1} parent=1 // pred_check
      _
    $region43: #{global_attention.1} parent=1 // pred_check_branch
      %292 = sbr.rel (0) target = $region45
    $region44: #{global_attention.1} parent=1 // pred_region
      %293 = dma.done [#allocation9], 16
    $region45: #{global_attention.1} parent=1 // pred_fallthru
      _
    %294 = vsyncpa [#allocation7], 1
    %295 = vsyncpa [#allocation9], 1

</llo_original>
